<compile_context>
chip_gen: v7x
topology: tpu7x:2x2x1
jax: 0.10.0
libtpu: 0.0.40
codegen_flags: <defaults>
</compile_context>

<pallas_src>
import math

import jax
import jax.numpy as jnp
from jax.experimental import pallas as pl
from jax.experimental.pallas import tpu as pltpu

SHIFT_ZERO = 1.0 / math.sqrt(2.0 * math.pi)

# K-axis policy kept static so the weight can be pre-padded once at init.
_TK = 512                # K tile when dim_in is streamed over the grid
_K_RESIDENT_MAX = 2048   # keep K fully resident in VMEM up to this size
_FAST_PATH_ELEMS = 1 << 16  # below this, fused XLA dot beats pallas_call overhead


def _round_up(x: int, m: int) -> int:
    return ((x + m - 1) // m) * m


def _k_plan(dim_in: int):
    """Returns (tk_eff, Kp): K tile size and padded K extent for dim_in."""
    if dim_in <= _K_RESIDENT_MAX:
        return dim_in, dim_in
    return _TK, _round_up(dim_in, _TK)


# ---------------------------------------------------------------------------
# Kernels: tiled linear (x @ W_t + b), f32 accumulation on the MXU.
# ---------------------------------------------------------------------------
def _fc_kernel_direct(x_ref, wt_ref, b_ref, o_ref):
    """f32 output: the output block (resident across K) IS the accumulator."""
    k = pl.program_id(2)

    @pl.when(k == 0)
    def _():
        o_ref[...] = jnp.zeros_like(o_ref)

    o_ref[...] += jnp.dot(x_ref[...], wt_ref[...],
                          preferred_element_type=jnp.float32)

    @pl.when(k == pl.num_programs(2) - 1)
    def _():
        o_ref[...] += b_ref[...]


def _fc_kernel_acc(x_ref, wt_ref, b_ref, o_ref, acc_ref):
    """Non-f32 output: accumulate in f32 VMEM scratch, cast once at the end."""
    k = pl.program_id(2)

    @pl.when(k == 0)
    def _():
        acc_ref[...] = jnp.zeros_like(acc_ref)

    acc_ref[...] += jnp.dot(x_ref[...], wt_ref[...],
                            preferred_element_type=jnp.float32)

    @pl.when(k == pl.num_programs(2) - 1)
    def _():
        o_ref[...] = (acc_ref[...] + b_ref[...]).astype(o_ref.dtype)


# ---------------------------------------------------------------------------
# Wrapper
# ---------------------------------------------------------------------------
def fc_mean(x, weight_t_c, bias2d, dim_in, dim_out, *,
            compute_dtype=jnp.bfloat16, force_pallas=False):
    """mean = x @ W.T + b via a tiled Pallas TPU kernel.

    Args:
      x:          [..., dim_in] activations (output keeps x.dtype).
      weight_t_c: [Kp, dim_out] pre-transposed, pre-cast (compute_dtype),
                  K-tail pre-padded weight (built ONCE at module init).
      bias2d:     [1, dim_out] f32 bias.
    """
    assert x.shape[-1] == dim_in
    out_dtype = x.dtype
    orig_shape = x.shape
    x2d = x.reshape(-1, dim_in)
    B = x2d.shape[0]

    tk_eff, Kp = _k_plan(dim_in)
    assert weight_t_c.shape == (Kp, dim_out)

    # ---- small-problem fast path: pallas_call fixed cost > the matmul ----
    if not force_pallas and B * dim_in * dim_out <= _FAST_PATH_ELEMS:
        y = jnp.dot(x2d.astype(compute_dtype), weight_t_c[:dim_in],
                    preferred_element_type=jnp.float32) + bias2d
        return y.astype(out_dtype).reshape(orig_shape[:-1] + (dim_out,))

    xc = x2d.astype(compute_dtype)
    if Kp != dim_in:
        # K is streamed: the tail must be zero so garbage never enters the sum.
        xc = jnp.pad(xc, ((0, 0), (0, Kp - dim_in)))

    # ---- chip-aware tile caps / VMEM budget (v5e/v6e 128 MiB, v7x 64 MiB) ----
    try:
        vmem_cap = int(pltpu.get_tpu_info().vmem_capacity_bytes)
    except Exception:  # conservative fallback (v7x-sized)
        vmem_cap = 64 << 20
    big_vmem = vmem_cap >= (96 << 20)
    tm_max = 1024 if big_vmem else 512
    tn_max = 1024 if big_vmem else 512

    tm = min(tm_max, _round_up(B, 8))
    tn = dim_out if dim_out <= 128 else min(tn_max, _round_up(dim_out, 128))

    # >= 2 blocks on a parallel axis so both v7x TensorCores get work.
    if pl.cdiv(B, tm) * pl.cdiv(dim_out, tn) < 2:
        if B > 8:
            tm = max(8, _round_up((B + 1) // 2, 8))
        elif dim_out > 128:
            tn = max(128, _round_up((dim_out + 1) // 2, 128))

    grid = (pl.cdiv(B, tm), pl.cdiv(dim_out, tn), Kp // tk_eff)
    k_tiled = grid[2] > 1

    # BlockSpecs (ragged M/N edges are masked by Pallas; no wrapper pad/slice).
    x_spec = pl.BlockSpec((tm, tk_eff), lambda i, j, k: (i, k))
    try:
        wt_spec = (pl.BlockSpec((tk_eff, tn), lambda i, j, k: (k, j),
                                pipeline_mode=pl.Buffered(3))
                   if k_tiled else
                   pl.BlockSpec((tk_eff, tn), lambda i, j, k: (k, j)))
    except (TypeError, AttributeError):
        wt_spec = pl.BlockSpec((tk_eff, tn), lambda i, j, k: (k, j))
    b_spec = pl.BlockSpec((1, tn), lambda i, j, k: (0, j))
    o_spec = pl.BlockSpec((tm, tn), lambda i, j, k: (i, j))

    direct = out_dtype == jnp.float32
    kernel = _fc_kernel_direct if direct else _fc_kernel_acc
    scratch = [] if direct else [pltpu.VMEM((tm, tn), jnp.float32)]

    itin = jnp.dtype(compute_dtype).itemsize
    itout = jnp.dtype(out_dtype).itemsize
    w_bufs = 3 if k_tiled else 2
    working = (2 * tm * tk_eff * itin + w_bufs * tk_eff * tn * itin
               + 2 * tn * 4 + 2 * tm * tn * itout
               + (0 if direct else tm * tn * 4))
    vmem_limit = int(min(max(working * 5 // 4 + (4 << 20), 16 << 20),
                         (vmem_cap * 85) // 100))

    cost = pl.CostEstimate(
        flops=2 * B * dim_in * dim_out,
        transcendentals=0,
        bytes_accessed=(B * dim_in * itin + Kp * dim_out * itin
                        + dim_out * 4 + B * dim_out * itout))

    mean = pl.pallas_call(
        kernel,
        out_shape=jax.ShapeDtypeStruct((B, dim_out), out_dtype),
        grid_spec=pltpu.PrefetchScalarGridSpec(
            num_scalar_prefetch=0,
            grid=grid,
            in_specs=[x_spec, wt_spec, b_spec],
            out_specs=o_spec,
            scratch_shapes=scratch),
        compiler_params=pltpu.CompilerParams(
            dimension_semantics=("parallel", "parallel", "arbitrary"),
            vmem_limit_bytes=vmem_limit),
        cost_estimate=cost,
    )(xc, weight_t_c, bias2d)

    return mean.reshape(orig_shape[:-1] + (dim_out,))


# ---------------------------------------------------------------------------
# Lightweight "Normal distribution" containers mirroring the PyTorch return.
# ---------------------------------------------------------------------------
class NormalDist:
    """Normal(loc, fixed std).  std is kept as a scalar; the full `scale`
    tensor is only materialized lazily if a consumer asks for it."""

    def __init__(self, loc, std):
        self.loc = loc
        self.std = float(std)

    @property
    def mean(self):
        return self.loc

    @property
    def scale(self):
        return jnp.full(self.loc.shape, self.std, dtype=self.loc.dtype)

    def sample(self, key):
        return self.loc + self.std * jax.random.normal(
            key, self.loc.shape, self.loc.dtype)

    rsample = sample

    def log_prob(self, value):
        var = self.std ** 2
        return (-((value - self.loc) ** 2) / (2.0 * var)
                - math.log(self.std) - 0.5 * math.log(2.0 * math.pi))


class DeterministicNormalDist(NormalDist):
    """Always 'samples' the mean (matches DeterministicNormal)."""

    def sample(self, key=None):
        return self.loc

    rsample = sample


class FullyConnectedFixedStdNormalPallas:
    def __init__(self, dim_in, dim_out, std=SHIFT_ZERO, normal_cls="Normal",
                 squeeze_feature_dim=False, *, key,
                 compute_dtype=jnp.bfloat16, force_pallas=False):
        if normal_cls == "Normal":
            self.normal_cls = NormalDist
        elif normal_cls == "Deterministic":
            self.normal_cls = DeterministicNormalDist
        else:
            raise ValueError("Normal class must be 'Normal' or 'Deterministic'!")
        if squeeze_feature_dim:
            assert dim_out == 1, "Can not squeeze feature dimension!"

        self.dim_in = dim_in
        self.dim_out = dim_out
        self.std = float(std)
        self.squeeze_feature_dim = squeeze_feature_dim
        self.compute_dtype = compute_dtype
        self.force_pallas = force_pallas

        # nn.Linear default init: U(-1/sqrt(dim_in), 1/sqrt(dim_in)).
        kw, kb = jax.random.split(key)
        bound = 1.0 / math.sqrt(dim_in)
        # Master parameters kept in f32, already transposed (x @ W_t layout).
        self.weight_t = jax.random.uniform(
            kw, (dim_in, dim_out), jnp.float32, -bound, bound)
        self.bias = jax.random.uniform(kb, (dim_out,), jnp.float32, -bound, bound)
        self.bias2d = self.bias.reshape(1, dim_out)

        # Compute copy built ONCE: bf16 cast + K-tail zero-pad (if K streamed).
        _, Kp = _k_plan(dim_in)
        wt_c = self.weight_t
        if Kp != dim_in:
            wt_c = jnp.pad(wt_c, ((0, Kp - dim_in), (0, 0)))
        self.weight_t_c = wt_c.astype(compute_dtype)

    def __call__(self, x):
        mean = fc_mean(x, self.weight_t_c, self.bias2d, self.dim_in, self.dim_out,
                       compute_dtype=self.compute_dtype,
                       force_pallas=self.force_pallas)
        if self.squeeze_feature_dim:
            mean = mean.squeeze(-1)
        # std stays a scalar inside the distribution (broadcast lazily).
        return self.normal_cls(mean, self.std)


if __name__ == "__main__":
    key = jax.random.PRNGKey(0)
    k_p1, k_p2, k_x1, k_x2, k_s = jax.random.split(key, 5)

    batch, seq, dim_in, dim_out = 2, 8, 32, 16

    # --- standard path: [batch, seq, dim_in] -> Deterministic normal over dim_out
    module = FullyConnectedFixedStdNormalPallas(
        dim_in, dim_out, normal_cls="Deterministic", key=k_p1,
        force_pallas=True)  # force the Pallas kernel even at demo-small shapes
    x = jax.random.normal(k_x1, (batch, seq, dim_in), jnp.float32)

    dist = module(x)
    jax.block_until_ready(dist.loc)

    ref_mean = x @ module.weight_t + module.bias           # f32 reference
    # bf16 MXU inputs with f32 accumulation -> loosened tolerance vs f32 ref.
    assert jnp.allclose(dist.loc, ref_mean, atol=2e-2, rtol=2e-2)
    assert dist.loc.dtype == x.dtype and dist.loc.shape == (batch, seq, dim_out)
    assert jnp.allclose(dist.scale,
                        jnp.full((batch, seq, dim_out), SHIFT_ZERO, jnp.float32))
    assert dist.sample().shape == (batch, seq, dim_out)    # Deterministic == mean
    assert jnp.allclose(dist.sample(), dist.loc)

    # Fast path (plain XLA dot, used automatically for tiny problems) agrees too.
    mean_fast = fc_mean(x, module.weight_t_c, module.bias2d, dim_in, dim_out)
    jax.block_until_ready(mean_fast)
    assert jnp.allclose(mean_fast, ref_mean, atol=2e-2, rtol=2e-2)

    # --- squeeze_feature_dim path (dim_out=1) with a stochastic Normal ---
    module_sq = FullyConnectedFixedStdNormalPallas(
        dim_in, 1, normal_cls="Normal", squeeze_feature_dim=True, key=k_p2,
        force_pallas=True)
    x2 = jax.random.normal(k_x2, (batch, seq, dim_in), jnp.float32)
    dist_sq = module_sq(x2)
    jax.block_until_ready(dist_sq.loc)

    ref_sq = (x2 @ module_sq.weight_t + module_sq.bias).squeeze(-1)
    assert dist_sq.loc.shape == (batch, seq)
    assert jnp.allclose(dist_sq.loc, ref_sq, atol=2e-2, rtol=2e-2)
    assert dist_sq.sample(k_s).shape == (batch, seq)

    print("KERNEL_OK")
</pallas_src>

<mosaic_0001>
module attributes {stable_mosaic.version = 11 : i64} {
  func.func @_fc_kernel_direct(%arg0: i32, %arg1: i32, %arg2: i32, %arg3: memref<8x32xbf16, #tpu.memory_space<vmem>>, %arg4: memref<32x16xbf16, #tpu.memory_space<vmem>>, %arg5: memref<1x16xf32, #tpu.memory_space<vmem>>, %arg6: memref<8x16xf32, #tpu.memory_space<vmem>>) attributes {dimension_semantics = [#tpu.dimension_semantics<parallel>, #tpu.dimension_semantics<parallel>, #tpu.dimension_semantics<arbitrary>], iteration_bounds = array<i64: 2, 1, 1>, scalar_prefetch = 0 : i64, scratch_operands = 0 : i64, tpu.core_type = #tpu.core_type<tc>, window_params = [{transform_indices = @transform_0, window_bounds = array<i64: 8, 32>}, {transform_indices = @transform_1, window_bounds = array<i64: 32, 16>}, {transform_indices = @transform_2, window_bounds = array<i64: 1, 16>}, {transform_indices = @transform_3, window_bounds = array<i64: 8, 16>}]} {
    %c0_i32 = arith.constant 0 : i32
    %0 = arith.cmpi eq, %arg2, %c0_i32 : i32
    %1 = arith.extui %0 : i1 to i32
    %c0_i32_0 = arith.constant 0 : i32
    %2 = arith.cmpi ne, %1, %c0_i32_0 : i32
    scf.if %2 {
      %cst_10 = arith.constant 0.000000e+00 : f32
      %12 = vector.broadcast %cst_10 : f32 to vector<8x16xf32>
      %c0_11 = arith.constant 0 : index
      %c0_12 = arith.constant 0 : index
      %13 = vector.load %arg6[%c0_11, %c0_12] : memref<8x16xf32, #tpu.memory_space<vmem>>, vector<8x16xf32>
      tpu.vector_store %arg6[%c0_11, %c0_12], %12 {strides = array<i32>} : memref<8x16xf32, #tpu.memory_space<vmem>>, vector<8x16xf32>,
    } else {
    }
    %c0 = arith.constant 0 : index
    %c0_1 = arith.constant 0 : index
    %3 = vector.load %arg6[%c0, %c0_1] : memref<8x16xf32, #tpu.memory_space<vmem>>, vector<8x16xf32>
    %c0_2 = arith.constant 0 : index
    %c0_3 = arith.constant 0 : index
    %4 = vector.load %arg3[%c0_2, %c0_3] : memref<8x32xbf16, #tpu.memory_space<vmem>>, vector<8x32xbf16>
    %c0_4 = arith.constant 0 : index
    %c0_5 = arith.constant 0 : index
    %5 = vector.load %arg4[%c0_4, %c0_5] : memref<32x16xbf16, #tpu.memory_space<vmem>>, vector<32x16xbf16>
    %cst = arith.constant dense<0.000000e+00> : vector<8x16xf32>
    %6 = tpu.matmul %4, %5, %cst {dimension_numbers = #tpu.dot_dimension_numbers<[1], [0], [0], [1], [0, 0, 1, 1], [], []>} : vector<8x32xbf16>, vector<32x16xbf16>, vector<8x16xf32> -> vector<8x16xf32>
    %7 = arith.addf %3, %6 : vector<8x16xf32>
    %c0_6 = arith.constant 0 : index
    %c0_7 = arith.constant 0 : index
    %8 = vector.load %arg6[%c0_6, %c0_7] : memref<8x16xf32, #tpu.memory_space<vmem>>, vector<8x16xf32>
    tpu.vector_store %arg6[%c0_6, %c0_7], %7 {strides = array<i32>} : memref<8x16xf32, #tpu.memory_space<vmem>>, vector<8x16xf32>,
    %c0_i32_8 = arith.constant 0 : i32
    %9 = arith.cmpi eq, %arg2, %c0_i32_8 : i32
    %10 = arith.extui %9 : i1 to i32
    %c0_i32_9 = arith.constant 0 : i32
    %11 = arith.cmpi ne, %10, %c0_i32_9 : i32
    scf.if %11 {
      %c0_10 = arith.constant 0 : index
      %c0_11 = arith.constant 0 : index
      %12 = vector.load %arg6[%c0_10, %c0_11] : memref<8x16xf32, #tpu.memory_space<vmem>>, vector<8x16xf32>
      %c0_12 = arith.constant 0 : index
      %c0_13 = arith.constant 0 : index
      %13 = vector.load %arg5[%c0_12, %c0_13] : memref<1x16xf32, #tpu.memory_space<vmem>>, vector<1x16xf32>
      %14 = vector.broadcast %13 : vector<1x16xf32> to vector<8x16xf32>
      %15 = arith.addf %12, %14 : vector<8x16xf32>
      %c0_14 = arith.constant 0 : index
      %c0_15 = arith.constant 0 : index
      %16 = vector.load %arg6[%c0_14, %c0_15] : memref<8x16xf32, #tpu.memory_space<vmem>>, vector<8x16xf32>
      tpu.vector_store %arg6[%c0_14, %c0_15], %15 {strides = array<i32>} : memref<8x16xf32, #tpu.memory_space<vmem>>, vector<8x16xf32>,
    } else {
    }
    return
  }
  func.func @transform_0(%arg0: i32, %arg1: i32, %arg2: i32) -> (i32, i32) {
    %c0_i32 = arith.constant 0 : i32
    return %arg0, %arg2 : i32, i32
  }
  func.func @transform_1(%arg0: i32, %arg1: i32, %arg2: i32) -> (i32, i32) {
    %c0_i32 = arith.constant 0 : i32
    return %arg2, %arg1 : i32, i32
  }
  func.func @transform_2(%arg0: i32, %arg1: i32, %arg2: i32) -> (i32, i32) {
    %c0_i32 = arith.constant 0 : i32
    %c0_i32_0 = arith.constant 0 : i32
    return %c0_i32, %arg1 : i32, i32
  }
  func.func @transform_3(%arg0: i32, %arg1: i32, %arg2: i32) -> (i32, i32) {
    %c0_i32 = arith.constant 0 : i32
    return %arg0, %arg1 : i32, i32
  }
}

</mosaic_0001>

<llo_original>
// kernel: tpu_custom_call.1
$region0: #{tpu_custom_call.1}
  #allocation0 [shape = 'u32[]', space=smem, size = 0x4, offset = 0x4, fixed_abs, tag = 'smem constant byte address 0x4 - core index']
  #allocation1 [shape = 'u32[144,128]{1,0:T(1,128)}', space=vmem, size = 0x12000, scoped, tag = 'internal scratch']
  %s0 = inlined_call_operand.vmem [shape: bf16[16,32], index: 0, kind: input, shape index: {}]
  %s1 = inlined_call_operand.vmem [shape: bf16[32,16], index: 1, kind: input, shape index: {}]
  %s2 = inlined_call_operand.vmem [shape: f32[1,16], index: 2, kind: input, shape index: {}]
  %s3 = inlined_call_operand.hbm [shape: f32[16,16], index: 3, kind: output, shape index: {}]
  %s4 = sld [smem:[#allocation0]]
  $region53: #{tpu_custom_call.1} parent=0
    _
  %s6 = ssub.s32 1, %s4
  %s7 = scalar_select 0, %s6, %s4
  $region1: #{tpu_custom_call.1} parent=0
    #allocation2 [shape = 'u8[8192]{0}', space=vmem, size = 0x2000, scoped, tag = 'output window, operand 0']
    #allocation3 [shape = 's32[2]{0}', space=sflag, size = 0x8, scoped, tag = 'scoped memory for tpu_custom_call.1']
    %8 = vsyncpa [#allocation3], 0
    %s9 = scalar_lea.sflag [#allocation3], 1
    %10 = vsyncpa %s9, 0
    loop: start=0, step=1, limit=4
    $region2: #{tpu_custom_call.1} parent=1 // loop_pre_header
      _
    $region3: #{tpu_custom_call.1} parent=1 // loop_header
      %s12 = sphi 0, %s16
      %p13 = scmp.ge.s32.totalorder %s12, 4
      %s19 = sphi 0, %s38
      %s20 = sphi 0, %s34
      %s21 = sphi 0, %s30
      %s22 = sphi 0, %s19
      %s23 = sphi 0, %s20
      %s24 = sphi 0, %s21
      %s25 = sphi 0, %s22
      %s26 = sphi 0, %s23
      %s27 = sphi 0, %s24
      %s43 = sphi 0, %s45
      %s46 = sphi 0, %s43
      %s47 = sphi 0, %s46
      %s63 = sphi 0, %s47
      %s71 = sphi 0, %s73
      %s74 = sphi 0, %s71
      %s75 = sphi 0, %s74
      %s91 = sphi 0, %s75
      %s97 = sphi 0, %s99
      %s100 = sphi 0, %s97
      %s101 = sphi 0, %s100
      %s117 = sphi 0, %s101
      %s125 = sphi 0, %s127
      %s128 = sphi 0, %s125
      %s129 = sphi 0, %s128
      %s145 = sphi 0, %s129
    $region4: #{tpu_custom_call.1} parent=1 // loop_header_branch
      %15 = sbr.rel (%p13) target = $region8
    $region5: #{tpu_custom_call.1} parent=1 // loop_body
      %s17 = ssub.s32 %s12, 1
      %s18 = ssub.s32 %s12, 2
      %s28 = sadd.s32 1, %s21
      %p29 = scmp.ge.s32.totalorder %s28, 1
      %s30 = scalar_select %p29, 0, %s28
      %s31 = sadd.s32 1, %s20
      %s32 = scalar_select %p29, %s31, %s20
      %p33 = scmp.ge.s32.totalorder %s32, 1
      %s34 = scalar_select %p33, 0, %s32
      %s35 = sadd.s32 1, %s19
      %s36 = scalar_select %p33, %s35, %s19
      %p37 = scmp.ge.s32.totalorder %s36, 2
      %s38 = scalar_select %p37, 0, %s36
      %s39 = ssub.s32 %s19, %s38
      %s40 = ssub.s32 %s21, %s30
      %s41 = sor.u32 %s39, %s40
      %p42 = scmp.eq.s32.totalorder %s41, 0
      %s44 = sadd.s32 %s43, 1
      %s45 = scalar_select %p42, %s43, %s44
      %p48 = pneg %p42
      %p49 = scmp.eq.s32.totalorder %s12, 1
      %p50 = por %p48, %p49
      %p51 = scmp.ne.s32.totalorder %s43, %s46
      %p52 = scmp.eq.s32.totalorder %s12, 0
      %p53 = por %p51, %p52
      %p54 = scmp.ne.s32.totalorder %s43, %s46
      %p55 = scmp.eq.s32.totalorder %s17, 1
      %p56 = por %p54, %p55
      %p57 = scmp.ne.s32.totalorder %s46, %s47
      %p58 = scmp.eq.s32.totalorder %s17, 0
      %p59 = por %p57, %p58
      %p60 = scmp.ne.s32.totalorder %s46, %s47
      %p61 = scmp.eq.s32.totalorder %s18, 1
      %p62 = por %p60, %p61
      %p64 = scmp.ne.s32.totalorder %s47, %s63
      %p65 = scmp.eq.s32.totalorder %s18, 0
      %p66 = por %p64, %p65
      %s67 = ssub.s32 %s21, %s30
      %s68 = ssub.s32 %s20, %s34
      %s69 = sor.u32 %s67, %s68
      %p70 = scmp.eq.s32.totalorder %s69, 0
      %s72 = sadd.s32 %s71, 1
      %s73 = scalar_select %p70, %s71, %s72
      %p76 = pneg %p70
      %p77 = scmp.eq.s32.totalorder %s12, 1
      %p78 = por %p76, %p77
      %p79 = scmp.ne.s32.totalorder %s71, %s74
      %p80 = scmp.eq.s32.totalorder %s12, 0
      %p81 = por %p79, %p80
      %p82 = scmp.ne.s32.totalorder %s71, %s74
      %p83 = scmp.eq.s32.totalorder %s17, 1
      %p84 = por %p82, %p83
      %p85 = scmp.ne.s32.totalorder %s74, %s75
      %p86 = scmp.eq.s32.totalorder %s17, 0
      %p87 = por %p85, %p86
      %p88 = scmp.ne.s32.totalorder %s74, %s75
      %p89 = scmp.eq.s32.totalorder %s18, 1
      %p90 = por %p88, %p89
      %p92 = scmp.ne.s32.totalorder %s75, %s91
      %p93 = scmp.eq.s32.totalorder %s18, 0
      %p94 = por %p92, %p93
      %s95 = ssub.s32 %s20, %s34
      %p96 = scmp.eq.s32.totalorder %s95, 0
      %s98 = sadd.s32 %s97, 1
      %s99 = scalar_select %p96, %s97, %s98
      %p102 = pneg %p96
      %p103 = scmp.eq.s32.totalorder %s12, 1
      %p104 = por %p102, %p103
      %p105 = scmp.ne.s32.totalorder %s97, %s100
      %p106 = scmp.eq.s32.totalorder %s12, 0
      %p107 = por %p105, %p106
      %p108 = scmp.ne.s32.totalorder %s97, %s100
      %p109 = scmp.eq.s32.totalorder %s17, 1
      %p110 = por %p108, %p109
      %p111 = scmp.ne.s32.totalorder %s100, %s101
      %p112 = scmp.eq.s32.totalorder %s17, 0
      %p113 = por %p111, %p112
      %p114 = scmp.ne.s32.totalorder %s100, %s101
      %p115 = scmp.eq.s32.totalorder %s18, 1
      %p116 = por %p114, %p115
      %p118 = scmp.ne.s32.totalorder %s101, %s117
      %p119 = scmp.eq.s32.totalorder %s18, 0
      %p120 = por %p118, %p119
      %s121 = ssub.s32 %s19, %s38
      %s122 = ssub.s32 %s20, %s34
      %s123 = sor.u32 %s121, %s122
      %p124 = scmp.eq.s32.totalorder %s123, 0
      %s126 = sadd.s32 %s125, 1
      %s127 = scalar_select %p124, %s125, %s126
      %p130 = pneg %p124
      %p131 = scmp.eq.s32.totalorder %s12, 1
      %p132 = por %p130, %p131
      %p133 = scmp.ne.s32.totalorder %s125, %s128
      %p134 = scmp.eq.s32.totalorder %s12, 0
      %p135 = por %p133, %p134
      %p136 = scmp.ne.s32.totalorder %s125, %s128
      %p137 = scmp.eq.s32.totalorder %s17, 1
      %p138 = por %p136, %p137
      %p139 = scmp.ne.s32.totalorder %s128, %s129
      %p140 = scmp.eq.s32.totalorder %s17, 0
      %p141 = por %p139, %p140
      %p142 = scmp.ne.s32.totalorder %s128, %s129
      %p143 = scmp.eq.s32.totalorder %s18, 1
      %p144 = por %p142, %p143
      %p146 = scmp.ne.s32.totalorder %s129, %s145
      %p147 = scmp.eq.s32.totalorder %s18, 0
      %p148 = por %p146, %p147
      %p149 = scmp.le.s32.totalorder 1, %s12
      %p150 = scmp.lt.s32.totalorder %s12, 3
      %p151 = pnand %p149, %p150
      %p152 = pneg %p151
      // Predicated region
      $region9: #{tpu_custom_call.1} parent=5 // pred_check
        _
      $region10: #{tpu_custom_call.1} parent=5 // pred_check_branch
        %154 = sbr.rel (%p151) target = $region12
      $region11: #{tpu_custom_call.1} parent=5 // pred_region
        %s155 = ssub.s32 %s12, 1
        // Predicated region
        $region13: #{tpu_custom_call.1} parent=11 // pred_check
          %p156 = pneg %p87
        $region14: #{tpu_custom_call.1} parent=11 // pred_check_branch
          %158 = sbr.rel (%p156) target = $region16
        $region15: #{tpu_custom_call.1} parent=11 // pred_region
          %s159 = smul.u32 4, %s24
          %p160 = scmp.lt.s32.totalorder %s159, 3
          %s161 = scalar_select %p160, %s159, 3
          %p162 = scmp.lt.s32.totalorder %s23, 0
          %s163 = scalar_select %p162, %s23, 0
          %s164 = sadd.s32 %s163, %s161
          %s165 = smul.addr %s164, 4
          %s166 = scalar_lea.vmem %s1, %s165
          %s167 = smul.u32 4, %s24
        $region16: #{tpu_custom_call.1} parent=11 // pred_fallthru
          _
        // Predicated region
        $region17: #{tpu_custom_call.1} parent=11 // pred_check
          %p168 = pneg %p113
        $region18: #{tpu_custom_call.1} parent=11 // pred_check_branch
          %170 = sbr.rel (%p168) target = $region20
        $region19: #{tpu_custom_call.1} parent=11 // pred_region
          %p171 = scmp.lt.s32.totalorder %s23, 0
          %s172 = scalar_select %p171, %s23, 0
          %s173 = scalar_lea.vmem %s2, %s172
        $region20: #{tpu_custom_call.1} parent=11 // pred_fallthru
          _
      $region12: #{tpu_custom_call.1} parent=5 // pred_fallthru
        _
      %p174 = scmp.lt.s32.totalorder %s12, 2
      // Predicated region
      $region21: #{tpu_custom_call.1} parent=5 // pred_check
        %p175 = pneg %p174
      $region22: #{tpu_custom_call.1} parent=5 // pred_check_branch
        %177 = sbr.rel (%p175) target = $region24
      $region23: #{tpu_custom_call.1} parent=5 // pred_region
        // Predicated region
        $region25: #{tpu_custom_call.1} parent=23 // pred_check
          %p178 = pneg %p53
        $region26: #{tpu_custom_call.1} parent=23 // pred_check_branch
          %180 = sbr.rel (%p178) target = $region28
        $region27: #{tpu_custom_call.1} parent=23 // pred_region
          %p181 = scmp.lt.s32.totalorder %s19, 1
          %s182 = scalar_select %p181, %s19, 1
          %p183 = scmp.lt.s32.totalorder %s21, 0
          %s184 = scalar_select %p183, %s21, 0
          %s185 = sadd.s32 %s184, %s182
          %s186 = smul.addr %s185, 4
          %s187 = scalar_lea.vmem %s0, %s186
        $region28: #{tpu_custom_call.1} parent=23 // pred_fallthru
          _
      $region24: #{tpu_custom_call.1} parent=5 // pred_fallthru
        _
      %p188 = scmp.le.s32.totalorder 1, %s12
      %p189 = scmp.lt.s32.totalorder %s12, 3
      %p190 = pnand %p188, %p189
      %p191 = pneg %p190
      // Predicated region
      $region29: #{tpu_custom_call.1} parent=5 // pred_check
        _
      $region30: #{tpu_custom_call.1} parent=5 // pred_check_branch
        %193 = sbr.rel (%p190) target = $region32
      $region31: #{tpu_custom_call.1} parent=5 // pred_region
        %s194 = ssub.s32 %s12, 1
        %p195 = scmp.lt.s32.totalorder %s22, 1
        %s196 = scalar_select %p195, %s22, 1
        %p197 = scmp.lt.s32.totalorder %s24, 0
        %s198 = scalar_select %p197, %s24, 0
        %s199 = sadd.s32 %s198, %s196
        %s200 = smul.addr %s199, 4
        %s201 = scalar_lea.vmem %s0, %s200
        %p202 = pneg %p59
        %p203 = pneg %p56
        %s204 = smul.u32 4, %s24
        %p205 = scmp.lt.s32.totalorder %s204, 3
        %s206 = scalar_select %p205, %s204, 3
        %p207 = scmp.lt.s32.totalorder %s23, 0
        %s208 = scalar_select %p207, %s23, 0
        %s209 = sadd.s32 %s208, %s206
        %s210 = smul.addr %s209, 4
        %s211 = scalar_lea.vmem %s1, %s210
        %p212 = pneg %p87
        %p213 = pneg %p84
        %p214 = scmp.lt.s32.totalorder %s23, 0
        %s215 = scalar_select %p214, %s23, 0
        %s216 = scalar_lea.vmem %s2, %s215
        %p217 = pneg %p113
        %p218 = pneg %p110
        %p219 = pneg %p141
        %p220 = pneg %p138
        %s221 = sand.u32 %s128, 1
        %s222 = scalar_lea.sflag [#allocation3], %s221
        %s223 = sand.u32 %s128, 1
        %s224 = smul.addr %s223, 8
        %s225 = scalar_lea.vmem [#allocation2], %s224
        %p226 = scmp.lt.s32.totalorder %s22, 1
        %s227 = scalar_select %p226, %s22, 1
        %p228 = scmp.lt.s32.totalorder %s24, 0
        %s229 = scalar_select %p228, %s24, 0
        %s230 = sadd.s32 %s229, %s227
        %s231 = smul.addr %s230, 4
        %s232 = scalar_lea.vmem %s0, %s231
        %s233 = smul.u32 4, %s24
        %p234 = scmp.lt.s32.totalorder %s233, 3
        %s235 = scalar_select %p234, %s233, 3
        %p236 = scmp.lt.s32.totalorder %s23, 0
        %s237 = scalar_select %p236, %s23, 0
        %s238 = sadd.s32 %s237, %s235
        %s239 = smul.addr %s238, 4
        %s240 = scalar_lea.vmem %s1, %s239
        %s241 = smul.u32 4, %s24
        %p242 = scmp.lt.s32.totalorder %s23, 0
        %s243 = scalar_select %p242, %s23, 0
        %s244 = scalar_lea.vmem %s2, %s243
        %p246 = scmp.eq.s32.totalorder %s24, 0
        // Predicated region
        $region33: #{tpu_custom_call.1} parent=31 // pred_check
          %p247 = pneg %p246
        $region34: #{tpu_custom_call.1} parent=31 // pred_check_branch
          %249 = sbr.rel (%p247) target = $region36
        $region35: #{tpu_custom_call.1} parent=31 // pred_region
          %vm250 = vcmask 130048
          %251 = vst.msk [vmem:[%s225] sm:$0xff] %vm250, 0.0
        $region36: #{tpu_custom_call.1} parent=31 // pred_fallthru
          _
        %v252 = vld [vmem:[%s225] sm:$0xff]
        %v253 = vld [vmem:[%s232] sm:$0xf]
        %v254 = vld [vmem:[%s240] sm:$0xf]
        %v255 = vld [vmem:[%s240 + $0x4] sm:$0xf]
        %v256 = vld [vmem:[%s240 + $0x8] sm:$0xf]
        %v257 = vld [vmem:[%s240 + $0xc] sm:$0xf]
        %v262 = vunpack.c.l.b16 %v254
        %v263 = vunpack.c.l.b16 %v255
        %v264 = vunpack.c.l.b16 %v256
        %v265 = vunpack.c.l.b16 %v257
        %v266 = vpack.c.b16 %v263, %v262
        %v267 = vpack.c.b16 %v265, %v264
        %vm270 = vcmask 261120
        %v272 = vsel %vm270, %v253, 0
        %274 = vmatprep.subr.bf16.mxu0 0
        %275 = vmatpush1.bf16.msra.mxu0 %v266
        %276 = vmatprep.subr.bf16.mxu0 0
        %277 = vmatpush1.bf16.msra.mxu0 %v267
        %278 = vmatprep.subr.bf16.mxu0 0
        %279 = vmatpush1.bf16.msra.mxu0 0
        %280 = vmatprep.subr.bf16.mxu0 0
        %281 = vmatpush1.bf16.msra.mxu0 0
        %282 = vmatprep.subr.bf16.mxu0 0
        %283 = vmatpush1.bf16.msra.mxu0 0
        %284 = vmatprep.subr.bf16.mxu0 0
        %285 = vmatpush1.bf16.msra.mxu0 0
        %286 = vmatprep.subr.bf16.mxu0 0
        %287 = vmatpush1.bf16.msra.mxu0 0
        %288 = vmatprep.subr.bf16.mxu0 0
        %289 = vmatpush1.bf16.msra.mxu0 0
        %290 = vmatprep.subr.bf16.mxu0 0
        %291 = vmatpush1.bf16.msra.mxu0 0
        %292 = vmatprep.subr.bf16.mxu0 0
        %293 = vmatpush1.bf16.msra.mxu0 0
        %294 = vmatprep.subr.bf16.mxu0 0
        %295 = vmatpush1.bf16.msra.mxu0 0
        %296 = vmatprep.subr.bf16.mxu0 0
        %297 = vmatpush1.bf16.msra.mxu0 0
        %298 = vmatprep.subr.bf16.mxu0 0
        %299 = vmatpush1.bf16.msra.mxu0 0
        %300 = vmatprep.subr.bf16.mxu0 0
        %301 = vmatpush1.bf16.msra.mxu0 0
        %302 = vmatprep.subr.bf16.mxu0 0
        %303 = vmatpush1.bf16.msra.mxu0 0
        %304 = vmatprep.subr.bf16.mxu0 0
        %305 = vmatpush1.bf16.msra.mxu0 0
        %306 = vmatprep.mubr.bf16.mxu0 0
        %307 = vmatmul.mubr.bf16.gmra.mrb[0].mxu0 %v272
        %v308 = vpop.f32.mrb[0].mxu0
        %v309 = vadd.f32 0.0, %v308
        %v310 = vpop.f32.mrb[0].mxu0
        %v311 = vpop.f32.mrb[0].mxu0
        %v312 = vpop.f32.mrb[0].mxu0
        %313 = vdwg.mxu0
        %v314 = vadd.f32 %v252, %v309
        %vm315 = vcmask 130048
        %316 = vst.msk [vmem:[%s225] sm:$0xff] %vm315, %v314
        // Predicated region
        $region37: #{tpu_custom_call.1} parent=31 // pred_check
          %p317 = pneg %p246
        $region38: #{tpu_custom_call.1} parent=31 // pred_check_branch
          %319 = sbr.rel (%p317) target = $region40
        $region39: #{tpu_custom_call.1} parent=31 // pred_region
          %v320 = vld [vmem:[%s225] sm:$0xff]
          %v321 = vld [vmem:[%s244] sm:$0x1]
          %v323 = vlaneseq
          %v324 = vshrl.u32 %v323, 7
          %v325 = vsub.s32 0, %v324
          %v326 = vrot.slane %v321, %v325
          %v328 = vadd.f32 %v320, %v326
          %329 = vst.msk [vmem:[%s225] sm:$0xff] %vm315, %v328
        $region40: #{tpu_custom_call.1} parent=31 // pred_fallthru
          _
        %s330 = sand.u32 %s128, 1
        %s331 = scalar_lea.sflag [#allocation3], %s330
        %s332 = sand.u32 %s128, 1
        %s333 = smul.addr %s332, 8
        %s334 = scalar_lea.vmem [#allocation2], %s333
        // Predicated region
        $region41: #{tpu_custom_call.1} parent=31 // pred_check
          %p335 = pneg %p138
        $region42: #{tpu_custom_call.1} parent=31 // pred_check_branch
          %337 = sbr.rel (%p335) target = $region44
        $region43: #{tpu_custom_call.1} parent=31 // pred_region
          %s339 = ssub.s32 128, 128
          %340 = vsyncadd %s331, %s339
          %s341 = sadd.s32 %s23, %s22
          %s342 = smul.addr %s341, 128
          %s343 = scalar_lea.hbm %s3, %s342
          %s345 = sshll.u32 %s334, 4
          %s346 = int_to_ptr.vmem [resolvable:$true] %s345
          %348 = dma.vmem_to_hbm [thread:$0]  %s346, 128, %s343, %s331
        $region44: #{tpu_custom_call.1} parent=31 // pred_fallthru
          _
      $region32: #{tpu_custom_call.1} parent=5 // pred_fallthru
        _
      %p349 = scmp.le.s32.totalorder 2, %s12
      // Predicated region
      $region45: #{tpu_custom_call.1} parent=5 // pred_check
        %p350 = pneg %p349
      $region46: #{tpu_custom_call.1} parent=5 // pred_check_branch
        %352 = sbr.rel (%p350) target = $region48
      $region47: #{tpu_custom_call.1} parent=5 // pred_region
        %s353 = ssub.s32 %s12, 2
        // Predicated region
        $region49: #{tpu_custom_call.1} parent=47 // pred_check
          %p354 = pneg %p144
        $region50: #{tpu_custom_call.1} parent=47 // pred_check_branch
          %356 = sbr.rel (%p354) target = $region52
        $region51: #{tpu_custom_call.1} parent=47 // pred_region
          %s357 = sand.u32 %s129, 1
          %s358 = scalar_lea.sflag [#allocation3], %s357
          %s359 = sand.u32 %s129, 1
          %s360 = smul.addr %s359, 8
          %s361 = scalar_lea.vmem [#allocation2], %s360
          %362 = dma.done %s358, 128
        $region52: #{tpu_custom_call.1} parent=47 // pred_fallthru
          _
      $region48: #{tpu_custom_call.1} parent=5 // pred_fallthru
        _
    $region6: #{tpu_custom_call.1} parent=1 // loop_footer
      %s16 = sadd.s32 1, %s12
    $region7: #{tpu_custom_call.1} parent=1 // loop_footer_branch
      %11 = sbr.rel target = $region3
    $region8: #{tpu_custom_call.1} parent=1 // loop_exit
      _
    %363 = vsyncpa [#allocation3], 1
    %s364 = scalar_lea.sflag [#allocation3], 1
    %365 = vsyncpa %s364, 1

</llo_original>
